<compile_context>
chip_gen: v7x
topology: tpu7x:2x2x1
jax: 0.10.0
libtpu: 0.0.40
codegen_flags: <defaults>
</compile_context>

<pallas_src>
import jax
import jax.numpy as jnp
from jax.experimental import pallas as pl
from jax.experimental.pallas import tpu as pltpu

NEG_FILL = -100000.0        # NOTE: overflows float16 to -inf (torch errors there);
                            # fine for f32/bf16 which this module uses.

_MIN_GRID_STEPS = 8         # enough steps to pipeline + shard across 2 TCs (v7x)
_MIN_TILE_BYTES = 64 << 10  # don't shrink tiles below this chasing step count


def _cdiv(a, b):
    return -(-a // b)


def _target_block_bytes():
    """~1 MiB x/out tiles; ~2 MiB on v7x (3.2 TB/s HBM amortizes per-step
    overhead worse; identified by its 64 MiB VMEM vs 128 MiB on v5e/v6e)."""
    try:
        info = pltpu.get_tpu_info()
        vmem = getattr(info, "vmem_capacity_bytes", None)
        if vmem and vmem <= 64 * 1024 * 1024:
            return 2 << 20
    except Exception:  # not on a TPU at trace time / API drift -> safe default
        pass
    return 1 << 20


def _choose_tiles(B, T, C, itemsize, target_bytes):
    """Pick (bb, bt): batch-block and T-block (multiple of 8 or == T)."""
    row_bytes = max(C * itemsize, 1)

    # bt: sublane tile along T.
    if T <= 8 or T * row_bytes <= target_bytes:
        bt = T
    else:
        bt = max(8, min(T, (target_bytes // row_bytes) // 8 * 8))

    # bb: tile along the flattened leading/batch axis (no alignment constraint).
    bb = max(1, min(B, target_bytes // (bt * row_bytes)))

    def _steps(bb_, bt_):
        return _cdiv(B, bb_) * _cdiv(T, bt_)

    # Split further until the grid pipelines / feeds both TCs, but keep tiles
    # large enough that the fixed per-step overhead stays amortized.
    while _steps(bb, bt) < _MIN_GRID_STEPS:
        if bb * bt * row_bytes <= 2 * _MIN_TILE_BYTES:
            break
        if bb > 1:
            bb = _cdiv(bb, 2)
        elif bt > 8:
            new_bt = max(8, (_cdiv(bt, 2) // 8) * 8)
            if new_bt == bt:
                break
            bt = new_bt
        else:
            break

    # Even out the batch blocks so the boundary block isn't pathologically small.
    bb = _cdiv(B, _cdiv(B, bb))
    return bb, bt


def _log_dropout_kernel(mask_ref, x_ref, o_ref):
    # One vselect per vreg.  The mask block may have size-1 dims (broadcast
    # mask); jnp.where broadcasts them against the (bb, bt, C) x tile.
    x = x_ref[...]
    m = mask_ref[...] != 0
    o_ref[...] = jnp.where(m, jnp.asarray(NEG_FILL, dtype=x.dtype), x)


def _masked_fill_pallas(x, annihilate_mask):
    """masked_fill(x, broadcast(mask), -100000.0) via a tiled Pallas kernel."""
    orig_shape = x.shape

    # PyTorch glue: unsqueeze(0) until mask rank matches x, then (virtually) expand.
    mask = annihilate_mask
    while mask.ndim < x.ndim:
        mask = mask[None, ...]
    if mask.ndim != x.ndim:
        raise ValueError(
            f"annihilate_mask rank {annihilate_mask.ndim} exceeds x rank {x.ndim}")
    for md, xd in zip(mask.shape, x.shape):
        if md not in (1, xd):
            raise ValueError(
                f"annihilate_mask shape {annihilate_mask.shape} is not expandable "
                f"to x shape {x.shape}")

    if x.ndim < 2 or x.size == 0:
        # 0-D/1-D/empty inputs have no useful TPU tiling; plain select.
        return jnp.where(jnp.broadcast_to(mask, x.shape),
                         jnp.asarray(NEG_FILL, x.dtype), x)

    # Normalize to 3D (B, T, C): T on sublanes, C on lanes, leading dims -> B.
    T, C = x.shape[-2], x.shape[-1]
    lead = x.shape[:-2]
    B = 1
    for d in lead:
        B *= d
    x3 = x.reshape(B, T, C)

    mlead = mask.shape[:-2]
    mT, mC = mask.shape[-2], mask.shape[-1]

    if all(d == 1 for d in mlead):
        # Batch-invariant mask: single block along B, DMA'd only when T-tile changes.
        mB = 1
        mask3 = mask.reshape(1, mT, mC).astype(jnp.int8)
    elif mlead == lead:
        # Per-batch mask: no host-side broadcast, only the int8 cast.
        mB = B
        mask3 = mask.reshape(B, mT, mC).astype(jnp.int8)
    else:
        # Mixed broadcast over leading dims: materialize only the leading
        # broadcast (<= B*mT*mC int8); trailing broadcast stays in the BlockSpec.
        mB = B
        mask3 = jnp.broadcast_to(mask, lead + (mT, mC)).reshape(B, mT, mC).astype(jnp.int8)

    itemsize = x3.dtype.itemsize
    bb, bt = _choose_tiles(B, T, C, itemsize, _target_block_bytes())
    nt, nb = _cdiv(T, bt), _cdiv(B, bb)

    # Grid: T-tiles outer, batch-tiles inner (innermost / fastest-varying), so
    # a batch-invariant mask keeps the same block index over the inner loop.
    grid = (nt, nb)

    # Mask broadcast dims become size-1 block dims (block == full mask dim).
    mb_blk = bb if mB == B else 1
    mt_blk = bt if mT == T else 1
    mc_blk = C if mC == C else 1

    def mask_index(t, b, _mB=mB, _mT=mT):
        return (b if _mB != 1 else 0, t if _mT != 1 else 0, 0)

    mask_spec = pl.BlockSpec((mb_blk, mt_blk, mc_blk), mask_index)
    x_spec = pl.BlockSpec((bb, bt, C), lambda t, b: (b, t, 0))
    out_spec = pl.BlockSpec((bb, bt, C), lambda t, b: (b, t, 0))

    x_bytes = B * T * C * itemsize
    cost = pl.CostEstimate(flops=B * T * C, transcendentals=0,
                           bytes_accessed=2 * x_bytes + int(mask3.size))

    # Keep well inside scoped VMEM; only raise the limit for pathological
    # single-huge-row cases (v5e default scoped VMEM is 16 MiB).
    tile_bytes = bb * bt * C * itemsize
    est_vmem = 4 * tile_bytes + 2 * mb_blk * mt_blk * mc_blk
    cp_kwargs = dict(dimension_semantics=("parallel", "parallel"))
    if est_vmem > 12 * 1024 * 1024:
        cp_kwargs["vmem_limit_bytes"] = min(int(est_vmem * 3 // 2), 48 * 1024 * 1024)

    out3 = pl.pallas_call(
        _log_dropout_kernel,
        out_shape=jax.ShapeDtypeStruct((B, T, C), x3.dtype),
        grid=grid,
        in_specs=[mask_spec, x_spec],
        out_specs=out_spec,
        # masked_fill result can reuse x's buffer: alias x (input index 1).
        input_output_aliases={1: 0},
        compiler_params=pltpu.CompilerParams(**cp_kwargs),
        cost_estimate=cost,
    )(mask3, x3)

    return out3.reshape(orig_shape)


def log_dropout_m(x, annihilate_mask=None, *, p=0.5, training=True):
    """JAX/Pallas port of LogDropoutM.forward."""
    if training and p > 0 and annihilate_mask is None:
        return x
    elif training and p > 0 and annihilate_mask is not None:
        return _masked_fill_pallas(x, annihilate_mask)
    else:
        return x


if __name__ == "__main__":
    key = jax.random.PRNGKey(0)
    kx, k1, k2, k3, k4 = jax.random.split(key, 5)

    B, T, C = 2, 8, 128
    x = jax.random.normal(kx, (B, T, C), dtype=jnp.float32)

    # Case 1: batch-invariant (T, C) mask -> broadcast over batch via BlockSpec.
    m_tc = jax.random.bernoulli(k1, 0.3, (T, C))
    out = jax.block_until_ready(log_dropout_m(x, m_tc, p=0.5, training=True))
    ref = jnp.where(jnp.broadcast_to(m_tc, x.shape), NEG_FILL, x)
    assert out.shape == x.shape and out.dtype == x.dtype
    assert jnp.array_equal(out, ref)

    # Case 2: full per-batch (B, T, C) mask (per-block mask spec, no broadcast).
    m_btc = jax.random.bernoulli(k2, 0.3, (B, T, C))
    out_b = jax.block_until_ready(log_dropout_m(x, m_btc, p=0.5, training=True))
    assert jnp.array_equal(out_b, jnp.where(m_btc, NEG_FILL, x))

    # Case 3: partially-broadcast (B, 1, C) mask (size-1 BlockSpec dim path,
    # no host-side expansion to x.shape).
    m_b1c = jax.random.bernoulli(k3, 0.3, (B, 1, C))
    out_p = jax.block_until_ready(log_dropout_m(x, m_b1c, p=0.5, training=True))
    assert jnp.array_equal(out_p, jnp.where(jnp.broadcast_to(m_b1c, x.shape), NEG_FILL, x))

    # Case 4: trailing 1-D (C,) mask (unsqueeze path, fully broadcast block).
    m_c = jax.random.bernoulli(k4, 0.3, (C,))
    out_c = jax.block_until_ready(log_dropout_m(x, m_c, p=0.5, training=True))
    assert jnp.array_equal(out_c, jnp.where(jnp.broadcast_to(m_c, x.shape), NEG_FILL, x))

    # Case 5: B == 1 with a longer T exercises the new T-axis tiling / multi-step grid.
    x_long = jax.random.normal(kx, (1, 1024, 128), dtype=jnp.float32)
    m_long = jax.random.bernoulli(k1, 0.3, (1024, 128))
    out_l = jax.block_until_ready(log_dropout_m(x_long, m_long, p=0.5, training=True))
    assert jnp.array_equal(out_l, jnp.where(jnp.broadcast_to(m_long, x_long.shape),
                                            NEG_FILL, x_long))

    # Case 6: training with no mask -> identity; eval mode -> identity.
    out_id = jax.block_until_ready(log_dropout_m(x, None, p=0.5, training=True))
    assert jnp.array_equal(out_id, x)
    out_ev = jax.block_until_ready(log_dropout_m(x, m_tc, p=0.5, training=False))
    assert jnp.array_equal(out_ev, x)

    print("KERNEL_OK")
</pallas_src>

<mosaic_0001>
module attributes {stable_mosaic.version = 11 : i64} {
  func.func @_log_dropout_kernel(%arg0: i32, %arg1: i32, %arg2: memref<1x8x128xi8, #tpu.memory_space<vmem>>, %arg3: memref<2x8x128xf32, #tpu.memory_space<vmem>>, %arg4: memref<2x8x128xf32, #tpu.memory_space<vmem>>) attributes {dimension_semantics = [#tpu.dimension_semantics<parallel>, #tpu.dimension_semantics<parallel>], iteration_bounds = array<i64: 1, 1>, scalar_prefetch = 0 : i64, scratch_operands = 0 : i64, tpu.core_type = #tpu.core_type<tc>, window_params = [{transform_indices = @transform_0, window_bounds = array<i64: 1, 8, 128>}, {transform_indices = @transform_1, window_bounds = array<i64: 2, 8, 128>}, {transform_indices = @transform_2, window_bounds = array<i64: 2, 8, 128>}]} {
    %c0 = arith.constant 0 : index
    %c0_0 = arith.constant 0 : index
    %c0_1 = arith.constant 0 : index
    %0 = vector.load %arg3[%c0, %c0_0, %c0_1] : memref<2x8x128xf32, #tpu.memory_space<vmem>>, vector<2x8x128xf32>
    %c0_2 = arith.constant 0 : index
    %c0_3 = arith.constant 0 : index
    %c0_4 = arith.constant 0 : index
    %1 = vector.load %arg2[%c0_2, %c0_3, %c0_4] : memref<1x8x128xi8, #tpu.memory_space<vmem>>, vector<1x8x128xi8>
    %c0_i8 = arith.constant 0 : i8
    %2 = vector.broadcast %c0_i8 : i8 to vector<1x8x128xi8>
    %3 = arith.cmpi ne, %1, %2 : vector<1x8x128xi8>
    %cst = arith.constant -1.000000e+05 : f32
    %4 = vector.shape_cast %3 : vector<1x8x128xi1> to vector<1x8x128xi1>
    %5 = vector.broadcast %4 : vector<1x8x128xi1> to vector<2x8x128xi1>
    %6 = vector.broadcast %cst : f32 to vector<2x8x128xf32>
    %7 = arith.select %5, %6, %0 : vector<2x8x128xi1>, vector<2x8x128xf32>
    %c0_5 = arith.constant 0 : index
    %c0_6 = arith.constant 0 : index
    %c0_7 = arith.constant 0 : index
    %8 = vector.load %arg4[%c0_5, %c0_6, %c0_7] : memref<2x8x128xf32, #tpu.memory_space<vmem>>, vector<2x8x128xf32>
    tpu.vector_store %arg4[%c0_5, %c0_6, %c0_7], %7 {strides = array<i32>} : memref<2x8x128xf32, #tpu.memory_space<vmem>>, vector<2x8x128xf32>,
    return
  }
  func.func @transform_0(%arg0: i32, %arg1: i32) -> (i32, i32, i32) {
    %c0_i32 = arith.constant 0 : i32
    %c0_i32_0 = arith.constant 0 : i32
    %c0_i32_1 = arith.constant 0 : i32
    return %c0_i32, %arg0, %c0_i32_0 : i32, i32, i32
  }
  func.func @transform_1(%arg0: i32, %arg1: i32) -> (i32, i32, i32) {
    %c0_i32 = arith.constant 0 : i32
    %c0_i32_0 = arith.constant 0 : i32
    return %arg1, %arg0, %c0_i32 : i32, i32, i32
  }
  func.func @transform_2(%arg0: i32, %arg1: i32) -> (i32, i32, i32) {
    %c0_i32 = arith.constant 0 : i32
    %c0_i32_0 = arith.constant 0 : i32
    return %arg1, %arg0, %c0_i32 : i32, i32, i32
  }
}

</mosaic_0001>

<llo_original>
// kernel: tpu_custom_call.1
$region0: #{tpu_custom_call.1}
  #allocation0 [shape = 'u32[]', space=smem, size = 0x4, offset = 0x4, fixed_abs, tag = 'smem constant byte address 0x4 - core index']
  #allocation1 [shape = 'u32[144,128]{1,0:T(1,128)}', space=vmem, size = 0x12000, scoped, tag = 'internal scratch']
  %s0 = inlined_call_operand.vmem [shape: s8[1,8,128], index: 0, kind: input, shape index: {}]
  %s1 = inlined_call_operand.hbm [shape: f32[2,8,128], index: 1, kind: input, shape index: {}, may-alias: {1,2}]
  %s2 = inlined_call_operand.hbm [shape: f32[2,8,128], index: 2, kind: output, shape index: {}, may-alias: {1,2}]
  %s3 = sld [smem:[#allocation0]]
  $region22: #{tpu_custom_call.1} parent=0
    _
  %s5 = ssub.s32 1, %s3
  %s6 = scalar_select 0, %s5, %s3
  $region1: #{tpu_custom_call.1} parent=0
    #allocation2 [shape = 'u8[8192]{0}', space=vmem, size = 0x2000, scoped, tag = 'input window, operand 1, single buffered']
    #allocation3 [shape = 's32[1]{0}', space=sflag, size = 0x4, scoped, tag = 'scoped memory for tpu_custom_call.1']
    #allocation4 [shape = 's32[1]{0}', space=sflag, size = 0x4, scoped, tag = 'scoped memory for tpu_custom_call.1']
    #allocation5 [shape = 'u8[8192]{0}', space=vmem, size = 0x2000, scoped, tag = 'output window, operand 0, single buffered']
    %7 = vsyncpa [#allocation3], 0
    %8 = vsyncpa [#allocation4], 0
    // Predicated region
    $region2: #{tpu_custom_call.1} parent=1 // pred_check
      _
    $region3: #{tpu_custom_call.1} parent=1 // pred_check_branch
      %10 = sbr.rel (0) target = $region5
    $region4: #{tpu_custom_call.1} parent=1 // pred_region
      _
    $region5: #{tpu_custom_call.1} parent=1 // pred_fallthru
      _
    // Predicated region
    $region6: #{tpu_custom_call.1} parent=1 // pred_check
      _
    $region7: #{tpu_custom_call.1} parent=1 // pred_check_branch
      %12 = sbr.rel (0) target = $region9
    $region8: #{tpu_custom_call.1} parent=1 // pred_region
      %s14 = ssub.s32 256, 256
      %15 = vsyncadd [#allocation3], %s14
      %s16 = sshll.u32 [#allocation2], 4
      %s17 = int_to_ptr.vmem [resolvable:$true] %s16
      %22 = dma.hbm_to_vmem [thread:$0]  %s1, 256, %s17, [#allocation3], 128, 128, 8
    $region9: #{tpu_custom_call.1} parent=1 // pred_fallthru
      _
    // Predicated region
    $region10: #{tpu_custom_call.1} parent=1 // pred_check
      _
    $region11: #{tpu_custom_call.1} parent=1 // pred_check_branch
      %24 = sbr.rel (0) target = $region13
    $region12: #{tpu_custom_call.1} parent=1 // pred_region
      %25 = dma.done [#allocation3], 256
    $region13: #{tpu_custom_call.1} parent=1 // pred_fallthru
      _
    %v28 = vld [vmem:[#allocation2] sm:$0xff]
    %v29 = vld [vmem:[#allocation2 + $0x8] sm:$0xff]
    %v30 = vld [vmem:[%s0] sm:$0x3]
    %vm31 = vnez %v30
    %v32 = vsel %vm31, 16843009, 0
    %v33 = vunpack.c.0.s8 %v32
    %vm34 = vcmp.ne.s32.totalorder %v33, 0
    %v35 = vsel %vm34, 1, 0
    %vm36 = vcmp.eq.s32.totalorder %v35, 1
    %v37 = vsel %vm36, -100000.0, %v28
    %v38 = vsel %vm36, -100000.0, %v29
    %39 = vst [vmem:[#allocation5] sm:$0xff] %v37
    %40 = vst [vmem:[#allocation5 + $0x8] sm:$0xff] %v38
    // Predicated region
    $region14: #{tpu_custom_call.1} parent=1 // pred_check
      _
    $region15: #{tpu_custom_call.1} parent=1 // pred_check_branch
      %42 = sbr.rel (0) target = $region17
    $region16: #{tpu_custom_call.1} parent=1 // pred_region
      %s44 = ssub.s32 256, 256
      %45 = vsyncadd [#allocation4], %s44
      %s46 = sshll.u32 [#allocation5], 4
      %s47 = int_to_ptr.vmem [resolvable:$true] %s46
      %52 = dma.vmem_to_hbm [thread:$0]  %s47, 256, %s2, [#allocation4], 128, 128, 8
    $region17: #{tpu_custom_call.1} parent=1 // pred_fallthru
      _
    // Predicated region
    $region18: #{tpu_custom_call.1} parent=1 // pred_check
      _
    $region19: #{tpu_custom_call.1} parent=1 // pred_check_branch
      %54 = sbr.rel (0) target = $region21
    $region20: #{tpu_custom_call.1} parent=1 // pred_region
      %55 = dma.done [#allocation4], 256
    $region21: #{tpu_custom_call.1} parent=1 // pred_fallthru
      _
    %56 = vsyncpa [#allocation3], 1
    %57 = vsyncpa [#allocation4], 1

</llo_original>
